<compile_context>
chip_gen: v7x
topology: tpu7x:2x2x1
jax: 0.10.0
libtpu: 0.0.40
codegen_flags: <defaults>
</compile_context>

<pallas_src>
import functools

import jax
import jax.numpy as jnp
from jax import lax
from jax.experimental import pallas as pl
from jax.experimental.pallas import tpu as pltpu


def _frdconv_kernel(x_ref, w_ref, b_ref, o_ref, *, H, W, kh, kw, dh, dw):
    # x_ref: (1, C_in, H*W)            one batch element, spatial lane-dense
    # w_ref: (C_out, C_in*kh*kw)       flattened OIHW weight
    # b_ref: (C_out, 1)                bias
    # o_ref: (1, C_out, H*W)           lane-dense output
    HW = H * W
    c_in = x_ref.shape[1]
    c_out = o_ref.shape[1]
    khw = kh * kw

    x = x_ref[0].astype(jnp.float32)       # (C_in, HW)
    w = w_ref[...].astype(jnp.float32)     # (C_out, C_in*kh*kw)

    # Flat spatial index, used to mask the implicit right/bottom ZeroPad2d.
    p = lax.broadcasted_iota(jnp.int32, (1, HW), 1)
    if kw > 1:
        if (W & (W - 1)) == 0:
            w_idx = jnp.bitwise_and(p, W - 1)   # p % W (power-of-two fast path)
        else:
            w_idx = p % W

    acc = jnp.zeros((c_out, HW), dtype=jnp.float32)
    for i in range(kh):
        for j in range(kw):
            s = i * dh * W + j * dw            # flat shift for tap (i, j)
            if s == 0:
                x_tap = x
            else:
                # x_tap[c, p] = x[c, (p + s) mod HW]; wrapped reads are masked below.
                x_tap = pltpu.roll(x, shift=HW - s, axis=1)

            mask = None
            if j > 0:
                # right ZeroPad2d columns: w + j*dw >= W  -> zero
                mask = w_idx < (W - j * dw)
            if i > 0:
                # bottom ZeroPad2d rows: h + i*dh >= H  <=>  p >= (H - i*dh)*W
                h_ok = p < (H - i * dh) * W
                mask = h_ok if mask is None else (mask & h_ok)
            if mask is not None:
                x_tap = jnp.where(mask, x_tap, 0.0)

            # VPU MAC: (C_out, 1) * (1, HW) broadcast, f32 accumulate.
            for c in range(c_in):
                col = c * khw + i * kw + j
                acc = acc + w[:, col:col + 1] * x_tap[c:c + 1, :]

    acc = acc + b_ref[...].astype(jnp.float32)     # (C_out, 1) broadcast
    o_ref[0] = acc.astype(o_ref.dtype)


def frdconv_pallas(x_nchw, weight_oihw, bias, kernel_size=(1, 3), dilation=(1, 1)):
    """FRDConv forward: zero-pad (right, bottom) then Conv2d(stride=1, dilation)."""
    N, C_in, H, W = x_nchw.shape
    kh, kw = kernel_size
    dh, dw = dilation
    C_out = weight_oihw.shape[0]
    HW = H * W

    # Layout glue (free / tiny): contiguous trailing reshapes only, no
    # transposes, no jnp.pad (padding is done by masking inside the kernel).
    x_flat = x_nchw.reshape(N, C_in, HW)                 # (N, C_in, H*W)
    w2d = weight_oihw.reshape(C_out, C_in * kh * kw)     # (C_out, C_in*kh*kw)
    b2d = bias.reshape(C_out, 1)                         # (C_out, 1)

    kernel = functools.partial(
        _frdconv_kernel, H=H, W=W, kh=kh, kw=kw, dh=dh, dw=dw
    )

    out_flat = pl.pallas_call(
        kernel,
        out_shape=jax.ShapeDtypeStruct((N, C_out, HW), x_nchw.dtype),
        grid=(N,),
        in_specs=[
            pl.BlockSpec((1, C_in, HW), lambda n: (n, 0, 0)),
            pl.BlockSpec((C_out, C_in * kh * kw), lambda n: (0, 0)),
            pl.BlockSpec((C_out, 1), lambda n: (0, 0)),
        ],
        out_specs=pl.BlockSpec((1, C_out, HW), lambda n: (n, 0, 0)),
        compiler_params=pltpu.CompilerParams(
            dimension_semantics=("parallel",),
        ),
    )(x_flat, w2d, b2d)

    # Back to PyTorch NCHW (free reshape of trailing dims).
    return out_flat.reshape(N, C_out, H, W)


def frdconv_reference(x_nchw, weight_oihw, bias, kernel_size=(1, 3), dilation=(1, 1)):
    kh, kw = kernel_size
    dh, dw = dilation
    right = (kw - 1) * dw
    bottom = (kh - 1) * dh
    out = lax.conv_general_dilated(
        x_nchw, weight_oihw,
        window_strides=(1, 1),
        padding=((0, bottom), (0, right)),
        rhs_dilation=(dh, dw),
        dimension_numbers=("NCHW", "OIHW", "NCHW"),
    )
    return out + bias.reshape(1, -1, 1, 1)


if __name__ == "__main__":
    # Module config (matches FRDConv defaults): kernel_size=[1,3], dilation=[1,1]
    in_channels, out_channels = 4, 8
    kernel_size = (1, 3)
    dilation = (1, 1)

    N, H, W = 2, 16, 16

    key = jax.random.PRNGKey(0)
    kx, kw_, kb = jax.random.split(key, 3)

    x = jax.random.normal(kx, (N, in_channels, H, W), dtype=jnp.float32)
    # deterministic synthetic parameters (Conv2d shapes: OIHW weight, (O,) bias)
    fan_in = in_channels * kernel_size[0] * kernel_size[1]
    bound = 1.0 / (fan_in ** 0.5)
    weight = jax.random.uniform(
        kw_, (out_channels, in_channels, kernel_size[0], kernel_size[1]),
        minval=-bound, maxval=bound, dtype=jnp.float32)
    bias = jax.random.uniform(
        kb, (out_channels,), minval=-bound, maxval=bound, dtype=jnp.float32)

    out = frdconv_pallas(x, weight, bias, kernel_size, dilation)
    out = jax.block_until_ready(out)

    ref = frdconv_reference(x, weight, bias, kernel_size, dilation)
    assert out.shape == (N, out_channels, H, W), out.shape
    assert jnp.allclose(out, ref, atol=1e-5, rtol=1e-5), float(
        jnp.max(jnp.abs(out - ref)))

    print("KERNEL_OK")
</pallas_src>

<mosaic_0001>
module attributes {stable_mosaic.version = 11 : i64} {
  func.func @_frdconv_kernel(%arg0: i32, %arg1: memref<1x4x256xf32, #tpu.memory_space<vmem>>, %arg2: memref<8x12xf32, #tpu.memory_space<vmem>>, %arg3: memref<8x1xf32, #tpu.memory_space<vmem>>, %arg4: memref<1x8x256xf32, #tpu.memory_space<vmem>>) attributes {dimension_semantics = [#tpu.dimension_semantics<parallel>], iteration_bounds = array<i64: 2>, scalar_prefetch = 0 : i64, scratch_operands = 0 : i64, tpu.core_type = #tpu.core_type<tc>, window_params = [{transform_indices = @transform_0, window_bounds = array<i64: 1, 4, 256>}, {pipeline_mode = #tpu.pipeline_mode<synchronous>, transform_indices = @transform_1, window_bounds = array<i64: 8, 12>}, {pipeline_mode = #tpu.pipeline_mode<synchronous>, transform_indices = @transform_2, window_bounds = array<i64: 8, 1>}, {transform_indices = @transform_3, window_bounds = array<i64: 1, 8, 256>}]} {
    %c0 = arith.constant 0 : index
    %c0_0 = arith.constant 0 : index
    %c0_1 = arith.constant 0 : index
    %0 = vector.load %arg1[%c0, %c0_0, %c0_1] : memref<1x4x256xf32, #tpu.memory_space<vmem>>, vector<1x4x256xf32>
    %1 = vector.shape_cast %0 : vector<1x4x256xf32> to vector<4x256xf32>
    %c0_2 = arith.constant 0 : index
    %c0_3 = arith.constant 0 : index
    %2 = vector.load %arg2[%c0_2, %c0_3] : memref<8x12xf32, #tpu.memory_space<vmem>>, vector<8x12xf32>
    %3 = tpu.iota {dimensions = array<i32: 1>} : vector<1x256xi32>
    %c15_i32 = arith.constant 15 : i32
    %4 = vector.broadcast %c15_i32 : i32 to vector<1x256xi32>
    %5 = arith.andi %3, %4 : vector<1x256xi32>
    %cst = arith.constant 0.000000e+00 : f32
    %6 = vector.broadcast %cst : f32 to vector<8x256xf32>
    %7 = vector.extract_strided_slice %2 {offsets = [0, 0], sizes = [8, 1], strides = [1, 1]} : vector<8x12xf32> to vector<8x1xf32>
    %8 = vector.extract_strided_slice %1 {offsets = [0, 0], sizes = [1, 256], strides = [1, 1]} : vector<4x256xf32> to vector<1x256xf32>
    %9 = vector.broadcast %7 : vector<8x1xf32> to vector<8x256xf32>
    %10 = vector.broadcast %8 : vector<1x256xf32> to vector<8x256xf32>
    %11 = arith.mulf %9, %10 : vector<8x256xf32>
    %12 = arith.addf %6, %11 : vector<8x256xf32>
    %13 = vector.extract_strided_slice %2 {offsets = [0, 3], sizes = [8, 1], strides = [1, 1]} : vector<8x12xf32> to vector<8x1xf32>
    %14 = vector.extract_strided_slice %1 {offsets = [1, 0], sizes = [1, 256], strides = [1, 1]} : vector<4x256xf32> to vector<1x256xf32>
    %15 = vector.broadcast %13 : vector<8x1xf32> to vector<8x256xf32>
    %16 = vector.broadcast %14 : vector<1x256xf32> to vector<8x256xf32>
    %17 = arith.mulf %15, %16 : vector<8x256xf32>
    %18 = arith.addf %12, %17 : vector<8x256xf32>
    %19 = vector.extract_strided_slice %2 {offsets = [0, 6], sizes = [8, 1], strides = [1, 1]} : vector<8x12xf32> to vector<8x1xf32>
    %20 = vector.extract_strided_slice %1 {offsets = [2, 0], sizes = [1, 256], strides = [1, 1]} : vector<4x256xf32> to vector<1x256xf32>
    %21 = vector.broadcast %19 : vector<8x1xf32> to vector<8x256xf32>
    %22 = vector.broadcast %20 : vector<1x256xf32> to vector<8x256xf32>
    %23 = arith.mulf %21, %22 : vector<8x256xf32>
    %24 = arith.addf %18, %23 : vector<8x256xf32>
    %25 = vector.extract_strided_slice %2 {offsets = [0, 9], sizes = [8, 1], strides = [1, 1]} : vector<8x12xf32> to vector<8x1xf32>
    %26 = vector.extract_strided_slice %1 {offsets = [3, 0], sizes = [1, 256], strides = [1, 1]} : vector<4x256xf32> to vector<1x256xf32>
    %27 = vector.broadcast %25 : vector<8x1xf32> to vector<8x256xf32>
    %28 = vector.broadcast %26 : vector<1x256xf32> to vector<8x256xf32>
    %29 = arith.mulf %27, %28 : vector<8x256xf32>
    %30 = arith.addf %24, %29 : vector<8x256xf32>
    %c255_i32 = arith.constant 255 : i32
    %31 = tpu.dynamic_rotate %1 by %c255_i32 dim 1 : vector<4x256xf32>, i32 -> vector<4x256xf32>
    %c15_i32_4 = arith.constant 15 : i32
    %32 = vector.broadcast %c15_i32_4 : i32 to vector<1x256xi32>
    %33 = arith.cmpi slt, %5, %32 : vector<1x256xi32>
    %cst_5 = arith.constant 0.000000e+00 : f32
    %34 = vector.shape_cast %33 : vector<1x256xi1> to vector<1x256xi1>
    %35 = vector.broadcast %34 : vector<1x256xi1> to vector<4x256xi1>
    %36 = vector.broadcast %cst_5 : f32 to vector<4x256xf32>
    %37 = arith.select %35, %31, %36 : vector<4x256xi1>, vector<4x256xf32>
    %38 = vector.extract_strided_slice %2 {offsets = [0, 1], sizes = [8, 1], strides = [1, 1]} : vector<8x12xf32> to vector<8x1xf32>
    %39 = vector.extract_strided_slice %37 {offsets = [0, 0], sizes = [1, 256], strides = [1, 1]} : vector<4x256xf32> to vector<1x256xf32>
    %40 = vector.broadcast %38 : vector<8x1xf32> to vector<8x256xf32>
    %41 = vector.broadcast %39 : vector<1x256xf32> to vector<8x256xf32>
    %42 = arith.mulf %40, %41 : vector<8x256xf32>
    %43 = arith.addf %30, %42 : vector<8x256xf32>
    %44 = vector.extract_strided_slice %2 {offsets = [0, 4], sizes = [8, 1], strides = [1, 1]} : vector<8x12xf32> to vector<8x1xf32>
    %45 = vector.extract_strided_slice %37 {offsets = [1, 0], sizes = [1, 256], strides = [1, 1]} : vector<4x256xf32> to vector<1x256xf32>
    %46 = vector.broadcast %44 : vector<8x1xf32> to vector<8x256xf32>
    %47 = vector.broadcast %45 : vector<1x256xf32> to vector<8x256xf32>
    %48 = arith.mulf %46, %47 : vector<8x256xf32>
    %49 = arith.addf %43, %48 : vector<8x256xf32>
    %50 = vector.extract_strided_slice %2 {offsets = [0, 7], sizes = [8, 1], strides = [1, 1]} : vector<8x12xf32> to vector<8x1xf32>
    %51 = vector.extract_strided_slice %37 {offsets = [2, 0], sizes = [1, 256], strides = [1, 1]} : vector<4x256xf32> to vector<1x256xf32>
    %52 = vector.broadcast %50 : vector<8x1xf32> to vector<8x256xf32>
    %53 = vector.broadcast %51 : vector<1x256xf32> to vector<8x256xf32>
    %54 = arith.mulf %52, %53 : vector<8x256xf32>
    %55 = arith.addf %49, %54 : vector<8x256xf32>
    %56 = vector.extract_strided_slice %2 {offsets = [0, 10], sizes = [8, 1], strides = [1, 1]} : vector<8x12xf32> to vector<8x1xf32>
    %57 = vector.extract_strided_slice %37 {offsets = [3, 0], sizes = [1, 256], strides = [1, 1]} : vector<4x256xf32> to vector<1x256xf32>
    %58 = vector.broadcast %56 : vector<8x1xf32> to vector<8x256xf32>
    %59 = vector.broadcast %57 : vector<1x256xf32> to vector<8x256xf32>
    %60 = arith.mulf %58, %59 : vector<8x256xf32>
    %61 = arith.addf %55, %60 : vector<8x256xf32>
    %c254_i32 = arith.constant 254 : i32
    %62 = tpu.dynamic_rotate %1 by %c254_i32 dim 1 : vector<4x256xf32>, i32 -> vector<4x256xf32>
    %c14_i32 = arith.constant 14 : i32
    %63 = vector.broadcast %c14_i32 : i32 to vector<1x256xi32>
    %64 = arith.cmpi slt, %5, %63 : vector<1x256xi32>
    %cst_6 = arith.constant 0.000000e+00 : f32
    %65 = vector.shape_cast %64 : vector<1x256xi1> to vector<1x256xi1>
    %66 = vector.broadcast %65 : vector<1x256xi1> to vector<4x256xi1>
    %67 = vector.broadcast %cst_6 : f32 to vector<4x256xf32>
    %68 = arith.select %66, %62, %67 : vector<4x256xi1>, vector<4x256xf32>
    %69 = vector.extract_strided_slice %2 {offsets = [0, 2], sizes = [8, 1], strides = [1, 1]} : vector<8x12xf32> to vector<8x1xf32>
    %70 = vector.extract_strided_slice %68 {offsets = [0, 0], sizes = [1, 256], strides = [1, 1]} : vector<4x256xf32> to vector<1x256xf32>
    %71 = vector.broadcast %69 : vector<8x1xf32> to vector<8x256xf32>
    %72 = vector.broadcast %70 : vector<1x256xf32> to vector<8x256xf32>
    %73 = arith.mulf %71, %72 : vector<8x256xf32>
    %74 = arith.addf %61, %73 : vector<8x256xf32>
    %75 = vector.extract_strided_slice %2 {offsets = [0, 5], sizes = [8, 1], strides = [1, 1]} : vector<8x12xf32> to vector<8x1xf32>
    %76 = vector.extract_strided_slice %68 {offsets = [1, 0], sizes = [1, 256], strides = [1, 1]} : vector<4x256xf32> to vector<1x256xf32>
    %77 = vector.broadcast %75 : vector<8x1xf32> to vector<8x256xf32>
    %78 = vector.broadcast %76 : vector<1x256xf32> to vector<8x256xf32>
    %79 = arith.mulf %77, %78 : vector<8x256xf32>
    %80 = arith.addf %74, %79 : vector<8x256xf32>
    %81 = vector.extract_strided_slice %2 {offsets = [0, 8], sizes = [8, 1], strides = [1, 1]} : vector<8x12xf32> to vector<8x1xf32>
    %82 = vector.extract_strided_slice %68 {offsets = [2, 0], sizes = [1, 256], strides = [1, 1]} : vector<4x256xf32> to vector<1x256xf32>
    %83 = vector.broadcast %81 : vector<8x1xf32> to vector<8x256xf32>
    %84 = vector.broadcast %82 : vector<1x256xf32> to vector<8x256xf32>
    %85 = arith.mulf %83, %84 : vector<8x256xf32>
    %86 = arith.addf %80, %85 : vector<8x256xf32>
    %87 = vector.extract_strided_slice %2 {offsets = [0, 11], sizes = [8, 1], strides = [1, 1]} : vector<8x12xf32> to vector<8x1xf32>
    %88 = vector.extract_strided_slice %68 {offsets = [3, 0], sizes = [1, 256], strides = [1, 1]} : vector<4x256xf32> to vector<1x256xf32>
    %89 = vector.broadcast %87 : vector<8x1xf32> to vector<8x256xf32>
    %90 = vector.broadcast %88 : vector<1x256xf32> to vector<8x256xf32>
    %91 = arith.mulf %89, %90 : vector<8x256xf32>
    %92 = arith.addf %86, %91 : vector<8x256xf32>
    %c0_7 = arith.constant 0 : index
    %c0_8 = arith.constant 0 : index
    %93 = vector.load %arg3[%c0_7, %c0_8] : memref<8x1xf32, #tpu.memory_space<vmem>>, vector<8x1xf32>
    %94 = vector.broadcast %93 : vector<8x1xf32> to vector<8x256xf32>
    %95 = arith.addf %92, %94 : vector<8x256xf32>
    %c0_9 = arith.constant 0 : index
    %c0_10 = arith.constant 0 : index
    %c0_11 = arith.constant 0 : index
    %96 = vector.load %arg4[%c0_9, %c0_10, %c0_11] : memref<1x8x256xf32, #tpu.memory_space<vmem>>, vector<1x8x256xf32>
    %97 = vector.shape_cast %96 : vector<1x8x256xf32> to vector<8x256xf32>
    %98 = vector.shape_cast %95 : vector<8x256xf32> to vector<1x8x256xf32>
    tpu.vector_store %arg4[%c0_9, %c0_10, %c0_11], %98 {strides = array<i32>} : memref<1x8x256xf32, #tpu.memory_space<vmem>>, vector<1x8x256xf32>,
    return
  }
  func.func @transform_0(%arg0: i32) -> (i32, i32, i32) {
    %c0_i32 = arith.constant 0 : i32
    %c0_i32_0 = arith.constant 0 : i32
    %c0_i32_1 = arith.constant 0 : i32
    return %arg0, %c0_i32, %c0_i32_0 : i32, i32, i32
  }
  func.func @transform_1(%arg0: i32) -> (i32, i32) {
    %c0_i32 = arith.constant 0 : i32
    %c0_i32_0 = arith.constant 0 : i32
    %c0_i32_1 = arith.constant 0 : i32
    return %c0_i32, %c0_i32_0 : i32, i32
  }
  func.func @transform_2(%arg0: i32) -> (i32, i32) {
    %c0_i32 = arith.constant 0 : i32
    %c0_i32_0 = arith.constant 0 : i32
    %c0_i32_1 = arith.constant 0 : i32
    return %c0_i32, %c0_i32_0 : i32, i32
  }
  func.func @transform_3(%arg0: i32) -> (i32, i32, i32) {
    %c0_i32 = arith.constant 0 : i32
    %c0_i32_0 = arith.constant 0 : i32
    %c0_i32_1 = arith.constant 0 : i32
    return %arg0, %c0_i32, %c0_i32_0 : i32, i32, i32
  }
}

</mosaic_0001>

<llo_original>
// kernel: tpu_custom_call.1
$region0: #{tpu_custom_call.1}
  #allocation0 [shape = 'u32[]', space=smem, size = 0x4, offset = 0x4, fixed_abs, tag = 'smem constant byte address 0x4 - core index']
  #allocation1 [shape = 'u32[144,128]{1,0:T(1,128)}', space=vmem, size = 0x12000, scoped, tag = 'internal scratch']
  %s0 = inlined_call_operand.hbm [shape: f32[2,4,256], index: 0, kind: input, shape index: {}]
  %s1 = inlined_call_operand.vmem [shape: f32[8,12], index: 1, kind: input, shape index: {}]
  %s2 = inlined_call_operand.vmem [shape: f32[8,1], index: 2, kind: input, shape index: {}]
  %s3 = inlined_call_operand.hbm [shape: f32[2,8,256], index: 3, kind: output, shape index: {}]
  %s4 = sld [smem:[#allocation0]]
  $region49: #{tpu_custom_call.1} parent=0
    _
  %s6 = ssub.s32 1, %s4
  %s7 = scalar_select 0, %s6, %s4
  $region1: #{tpu_custom_call.1} parent=0
    #allocation2 [shape = 'u8[8192]{0}', space=vmem, size = 0x2000, scoped, tag = 'input window, operand 0']
    #allocation3 [shape = 's32[2]{0}', space=sflag, size = 0x8, scoped, tag = 'scoped memory for tpu_custom_call.1']
    #allocation4 [shape = 's32[2]{0}', space=sflag, size = 0x8, scoped, tag = 'scoped memory for tpu_custom_call.1']
    #allocation5 [shape = 'u8[16384]{0}', space=vmem, size = 0x4000, scoped, tag = 'output window, operand 0']
    %8 = vsyncpa [#allocation3], 0
    %s9 = scalar_lea.sflag [#allocation3], 1
    %10 = vsyncpa %s9, 0
    %11 = vsyncpa [#allocation4], 0
    %s12 = scalar_lea.sflag [#allocation4], 1
    %13 = vsyncpa %s12, 0
    loop: start=0, step=1, limit=4
    $region2: #{tpu_custom_call.1} parent=1 // loop_pre_header
      _
    $region3: #{tpu_custom_call.1} parent=1 // loop_header
      %s15 = sphi 0, %s19
      %p16 = scmp.ge.s32.totalorder %s15, 4
      %s25 = sphi 0, %s27
      %s28 = sphi 0, %s25
      %s29 = sphi 0, %s28
      %s45 = sphi 0, %s29
      %s49 = sphi 0, %s49
      %s51 = sphi 0, %s49
      %s52 = sphi 0, %s51
      %s66 = sphi 0, %s52
      %s70 = sphi 0, %s70
      %s72 = sphi 0, %s70
      %s73 = sphi 0, %s72
      %s87 = sphi 0, %s73
      %s93 = sphi 0, %s95
      %s96 = sphi 0, %s93
      %s97 = sphi 0, %s96
      %s113 = sphi 0, %s97
    $region4: #{tpu_custom_call.1} parent=1 // loop_header_branch
      %18 = sbr.rel (%p16) target = $region8
    $region5: #{tpu_custom_call.1} parent=1 // loop_body
      %s20 = ssub.s32 %s15, 1
      %s21 = ssub.s32 %s15, 2
      %s22 = sadd.s32 %s15, 1
      %s23 = ssub.s32 %s15, %s22
      %p24 = scmp.eq.s32.totalorder %s23, 0
      %s26 = sadd.s32 %s25, 1
      %s27 = scalar_select %p24, %s25, %s26
      %p30 = pneg %p24
      %p31 = scmp.eq.s32.totalorder %s15, 1
      %p32 = por %p30, %p31
      %p33 = scmp.ne.s32.totalorder %s25, %s28
      %p34 = scmp.eq.s32.totalorder %s15, 0
      %p35 = por %p33, %p34
      %p36 = scmp.ne.s32.totalorder %s25, %s28
      %p37 = scmp.eq.s32.totalorder %s20, 1
      %p38 = por %p36, %p37
      %p39 = scmp.ne.s32.totalorder %s28, %s29
      %p40 = scmp.eq.s32.totalorder %s20, 0
      %p41 = por %p39, %p40
      %p42 = scmp.ne.s32.totalorder %s28, %s29
      %p43 = scmp.eq.s32.totalorder %s21, 1
      %p44 = por %p42, %p43
      %p46 = scmp.ne.s32.totalorder %s29, %s45
      %p47 = scmp.eq.s32.totalorder %s21, 0
      %p48 = por %p46, %p47
      %s50 = sadd.s32 %s49, 1
      %p53 = scmp.eq.s32.totalorder %s15, 1
      %p54 = scmp.ne.s32.totalorder %s49, %s51
      %p55 = scmp.eq.s32.totalorder %s15, 0
      %p56 = por %p54, %p55
      %p57 = scmp.ne.s32.totalorder %s49, %s51
      %p58 = scmp.eq.s32.totalorder %s20, 1
      %p59 = por %p57, %p58
      %p60 = scmp.ne.s32.totalorder %s51, %s52
      %p61 = scmp.eq.s32.totalorder %s20, 0
      %p62 = por %p60, %p61
      %p63 = scmp.ne.s32.totalorder %s51, %s52
      %p64 = scmp.eq.s32.totalorder %s21, 1
      %p65 = por %p63, %p64
      %p67 = scmp.ne.s32.totalorder %s52, %s66
      %p68 = scmp.eq.s32.totalorder %s21, 0
      %p69 = por %p67, %p68
      %s71 = sadd.s32 %s70, 1
      %p74 = scmp.eq.s32.totalorder %s15, 1
      %p75 = scmp.ne.s32.totalorder %s70, %s72
      %p76 = scmp.eq.s32.totalorder %s15, 0
      %p77 = por %p75, %p76
      %p78 = scmp.ne.s32.totalorder %s70, %s72
      %p79 = scmp.eq.s32.totalorder %s20, 1
      %p80 = por %p78, %p79
      %p81 = scmp.ne.s32.totalorder %s72, %s73
      %p82 = scmp.eq.s32.totalorder %s20, 0
      %p83 = por %p81, %p82
      %p84 = scmp.ne.s32.totalorder %s72, %s73
      %p85 = scmp.eq.s32.totalorder %s21, 1
      %p86 = por %p84, %p85
      %p88 = scmp.ne.s32.totalorder %s73, %s87
      %p89 = scmp.eq.s32.totalorder %s21, 0
      %p90 = por %p88, %p89
      %s91 = ssub.s32 %s15, %s22
      %p92 = scmp.eq.s32.totalorder %s91, 0
      %s94 = sadd.s32 %s93, 1
      %s95 = scalar_select %p92, %s93, %s94
      %p98 = pneg %p92
      %p99 = scmp.eq.s32.totalorder %s15, 1
      %p100 = por %p98, %p99
      %p101 = scmp.ne.s32.totalorder %s93, %s96
      %p102 = scmp.eq.s32.totalorder %s15, 0
      %p103 = por %p101, %p102
      %p104 = scmp.ne.s32.totalorder %s93, %s96
      %p105 = scmp.eq.s32.totalorder %s20, 1
      %p106 = por %p104, %p105
      %p107 = scmp.ne.s32.totalorder %s96, %s97
      %p108 = scmp.eq.s32.totalorder %s20, 0
      %p109 = por %p107, %p108
      %p110 = scmp.ne.s32.totalorder %s96, %s97
      %p111 = scmp.eq.s32.totalorder %s21, 1
      %p112 = por %p110, %p111
      %p114 = scmp.ne.s32.totalorder %s97, %s113
      %p115 = scmp.eq.s32.totalorder %s21, 0
      %p116 = por %p114, %p115
      %p117 = scmp.le.s32.totalorder 1, %s15
      %p118 = scmp.lt.s32.totalorder %s15, 3
      %p119 = pnand %p117, %p118
      %p120 = pneg %p119
      // Predicated region
      $region9: #{tpu_custom_call.1} parent=5 // pred_check
        _
      $region10: #{tpu_custom_call.1} parent=5 // pred_check_branch
        %122 = sbr.rel (%p119) target = $region12
      $region11: #{tpu_custom_call.1} parent=5 // pred_region
        %s123 = ssub.s32 %s15, 1
        // Predicated region
        $region13: #{tpu_custom_call.1} parent=11 // pred_check
          %p124 = pneg %p62
        $region14: #{tpu_custom_call.1} parent=11 // pred_check_branch
          %126 = sbr.rel (%p124) target = $region16
        $region15: #{tpu_custom_call.1} parent=11 // pred_region
          _
        $region16: #{tpu_custom_call.1} parent=11 // pred_fallthru
          _
        // Predicated region
        $region17: #{tpu_custom_call.1} parent=11 // pred_check
          %p127 = pneg %p83
        $region18: #{tpu_custom_call.1} parent=11 // pred_check_branch
          %129 = sbr.rel (%p127) target = $region20
        $region19: #{tpu_custom_call.1} parent=11 // pred_region
          _
        $region20: #{tpu_custom_call.1} parent=11 // pred_fallthru
          _
      $region12: #{tpu_custom_call.1} parent=5 // pred_fallthru
        _
      %p130 = scmp.lt.s32.totalorder %s15, 2
      // Predicated region
      $region21: #{tpu_custom_call.1} parent=5 // pred_check
        %p131 = pneg %p130
      $region22: #{tpu_custom_call.1} parent=5 // pred_check_branch
        %133 = sbr.rel (%p131) target = $region24
      $region23: #{tpu_custom_call.1} parent=5 // pred_region
        // Predicated region
        $region25: #{tpu_custom_call.1} parent=23 // pred_check
          %p134 = pneg %p35
        $region26: #{tpu_custom_call.1} parent=23 // pred_check_branch
          %136 = sbr.rel (%p134) target = $region28
        $region27: #{tpu_custom_call.1} parent=23 // pred_region
          %s137 = sand.u32 %s25, 1
          %s138 = scalar_lea.sflag [#allocation3], %s137
          %s139 = sand.u32 %s25, 1
          %s140 = smul.addr %s139, 8
          %s141 = scalar_lea.vmem [#allocation2], %s140
          %s143 = ssub.s32 128, 128
          %144 = vsyncadd %s138, %s143
          %s145 = smul.addr %s15, 2
          %s146 = smul.addr %s145, 64
          %s147 = scalar_lea.hbm %s0, %s146
          %s149 = sshll.u32 %s141, 4
          %s150 = int_to_ptr.vmem [resolvable:$true] %s149
          %152 = dma.hbm_to_vmem [thread:$0]  %s147, 128, %s150, %s138
        $region28: #{tpu_custom_call.1} parent=23 // pred_fallthru
          _
      $region24: #{tpu_custom_call.1} parent=5 // pred_fallthru
        _
      %p153 = scmp.le.s32.totalorder 1, %s15
      %p154 = scmp.lt.s32.totalorder %s15, 3
      %p155 = pnand %p153, %p154
      %p156 = pneg %p155
      // Predicated region
      $region29: #{tpu_custom_call.1} parent=5 // pred_check
        _
      $region30: #{tpu_custom_call.1} parent=5 // pred_check_branch
        %158 = sbr.rel (%p155) target = $region32
      $region31: #{tpu_custom_call.1} parent=5 // pred_region
        %s159 = ssub.s32 %s15, 1
        %s160 = sand.u32 %s28, 1
        %s161 = scalar_lea.sflag [#allocation3], %s160
        %s162 = sand.u32 %s28, 1
        %s163 = smul.addr %s162, 8
        %s164 = scalar_lea.vmem [#allocation2], %s163
        // Predicated region
        $region33: #{tpu_custom_call.1} parent=31 // pred_check
          %p165 = pneg %p41
        $region34: #{tpu_custom_call.1} parent=31 // pred_check_branch
          %167 = sbr.rel (%p165) target = $region36
        $region35: #{tpu_custom_call.1} parent=31 // pred_region
          %168 = dma.done %s161, 128
        $region36: #{tpu_custom_call.1} parent=31 // pred_fallthru
          _
        %s169 = sand.u32 %s28, 1
        %s170 = scalar_lea.sflag [#allocation3], %s169
        %s171 = sand.u32 %s28, 1
        %s172 = smul.addr %s171, 8
        %s173 = scalar_lea.vmem [#allocation2], %s172
        %p174 = pneg %p41
        %p175 = pneg %p38
        %p176 = pneg %p62
        %p177 = pneg %p59
        %p178 = pneg %p83
        %p179 = pneg %p80
        %p180 = pneg %p109
        %p181 = pneg %p106
        %s182 = sand.u32 %s96, 1
        %s183 = scalar_lea.sflag [#allocation4], %s182
        %s184 = sand.u32 %s96, 1
        %s185 = smul.addr %s184, 16
        %s186 = scalar_lea.vmem [#allocation5], %s185
        %v187 = vld [vmem:[%s164] sm:$0xff]
        %v188 = vld [vmem:[%s1] sm:$0xff]
        %v189 = vlaneseq
        %v190 = vand.u32 %v189, 127
        %v191 = vadd.s32 %v190, 128
        %v192 = vand.u32 %v190, 15
        %v193 = vand.u32 %v191, 15
        %195 = vset.pattern.permute.xlu0 0
        %196 = vperm.xlu0 %195, %v188
        %v197 = vpop.permute.xlu0 %196
        %v200 = vlaneseq
        %v201 = vshrl.u32 %v200, 7
        %v202 = vsub.s32 0, %v201
        %v203 = vrot.slane %v187, %v202
        %v204 = vlaneseq
        %v205 = vshrl.u32 %v204, 7
        %v206 = vsub.s32 4, %v205
        %v207 = vrot.slane %v187, %v206
        %v210 = vlaneseq
        %v211 = vshrl.u32 %v210, 7
        %v212 = vsub.s32 0, %v211
        %v213 = vrot.slane %v203, %v212
        %v214 = vlaneseq
        %v215 = vshrl.u32 %v214, 7
        %v216 = vsub.s32 0, %v215
        %v217 = vrot.slane %v207, %v216
        %v218 = vmul.f32 %v197, %v213
        %v219 = vmul.f32 %v197, %v217
        %v220 = vadd.f32 %v218, 0.0
        %v221 = vadd.f32 %v219, 0.0
        %222 = vset.pattern.permute.xlu0 3
        %223 = vperm.xlu0 %222, %v188
        %v224 = vpop.permute.xlu0 %223
        %v226 = vlaneseq
        %v227 = vshrl.u32 %v226, 7
        %v228 = vsub.s32 1, %v227
        %v229 = vrot.slane %v187, %v228
        %v230 = vlaneseq
        %v231 = vshrl.u32 %v230, 7
        %v232 = vsub.s32 5, %v231
        %v233 = vrot.slane %v187, %v232
        %v236 = vlaneseq
        %v237 = vshrl.u32 %v236, 7
        %v238 = vsub.s32 1, %v237
        %v239 = vrot.slane %v229, %v238
        %v240 = vlaneseq
        %v241 = vshrl.u32 %v240, 7
        %v242 = vsub.s32 1, %v241
        %v243 = vrot.slane %v233, %v242
        %v244 = vmul.f32 %v224, %v239
        %v245 = vmul.f32 %v224, %v243
        %v246 = vadd.f32 %v220, %v244
        %v247 = vadd.f32 %v221, %v245
        %248 = vset.pattern.permute.xlu0 6
        %249 = vperm.xlu0 %248, %v188
        %v250 = vpop.permute.xlu0 %249
        %v252 = vlaneseq
        %v253 = vshrl.u32 %v252, 7
        %v254 = vsub.s32 2, %v253
        %v255 = vrot.slane %v187, %v254
        %v256 = vlaneseq
        %v257 = vshrl.u32 %v256, 7
        %v258 = vsub.s32 6, %v257
        %v259 = vrot.slane %v187, %v258
        %v262 = vlaneseq
        %v263 = vshrl.u32 %v262, 7
        %v264 = vsub.s32 2, %v263
        %v265 = vrot.slane %v255, %v264
        %v266 = vlaneseq
        %v267 = vshrl.u32 %v266, 7
        %v268 = vsub.s32 2, %v267
        %v269 = vrot.slane %v259, %v268
        %v270 = vmul.f32 %v250, %v265
        %v271 = vmul.f32 %v250, %v269
        %v272 = vadd.f32 %v246, %v270
        %v273 = vadd.f32 %v247, %v271
        %274 = vset.pattern.permute.xlu0 9
        %275 = vperm.xlu0 %274, %v188
        %v276 = vpop.permute.xlu0 %275
        %v278 = vlaneseq
        %v279 = vshrl.u32 %v278, 7
        %v280 = vsub.s32 3, %v279
        %v281 = vrot.slane %v187, %v280
        %v282 = vlaneseq
        %v283 = vshrl.u32 %v282, 7
        %v284 = vsub.s32 7, %v283
        %v285 = vrot.slane %v187, %v284
        %v288 = vlaneseq
        %v289 = vshrl.u32 %v288, 7
        %v290 = vsub.s32 3, %v289
        %v291 = vrot.slane %v281, %v290
        %v292 = vlaneseq
        %v293 = vshrl.u32 %v292, 7
        %v294 = vsub.s32 3, %v293
        %v295 = vrot.slane %v285, %v294
        %v296 = vmul.f32 %v276, %v291
        %v297 = vmul.f32 %v276, %v295
        %v298 = vadd.f32 %v272, %v296
        %v299 = vadd.f32 %v273, %v297
        %v300 = vcombine.high %v187, %v187
        %302 = vrot.lane.b32.xlu0 %v187, 127
        %v303 = vpop.permute.xlu0 %302
        %304 = vrot.lane.b32.xlu0 %v300, 127
        %v305 = vpop.permute.xlu0 %304
        %vm306 = vcmp.lt.s32.totalorder %v190, 127
        %v307 = vsel %vm306, %v303, %v305
        %v308 = vsel %vm306, %v305, %v303
        %vm309 = vcmp.lt.s32.totalorder %v192, 15
        %vm310 = vcmp.lt.s32.totalorder %v193, 15
        %v311 = vsel %vm309, 1, 0
        %v312 = vsel %vm310, 1, 0
        %vm313 = vcmp.eq.s32.totalorder %v311, 1
        %vm314 = vcmp.eq.s32.totalorder %v312, 1
        %v315 = vsel %vm313, %v307, 0.0
        %v316 = vsel %vm314, %v308, 0.0
        %317 = vset.pattern.permute.xlu0 1
        %318 = vperm.xlu0 %317, %v188
        %v319 = vpop.permute.xlu0 %318
        %v321 = vlaneseq
        %v322 = vshrl.u32 %v321, 7
        %v323 = vsub.s32 0, %v322
        %v324 = vrot.slane %v315, %v323
        %v325 = vlaneseq
        %v326 = vshrl.u32 %v325, 7
        %v327 = vsub.s32 0, %v326
        %v328 = vrot.slane %v316, %v327
        %v329 = vmul.f32 %v319, %v324
        %v330 = vmul.f32 %v319, %v328
        %v331 = vadd.f32 %v298, %v329
        %v332 = vadd.f32 %v299, %v330
        %333 = vset.pattern.permute.xlu0 4
        %334 = vperm.xlu0 %333, %v188
        %v335 = vpop.permute.xlu0 %334
        %v337 = vlaneseq
        %v338 = vshrl.u32 %v337, 7
        %v339 = vsub.s32 1, %v338
        %v340 = vrot.slane %v315, %v339
        %v341 = vlaneseq
        %v342 = vshrl.u32 %v341, 7
        %v343 = vsub.s32 1, %v342
        %v344 = vrot.slane %v316, %v343
        %v345 = vmul.f32 %v335, %v340
        %v346 = vmul.f32 %v335, %v344
        %v347 = vadd.f32 %v331, %v345
        %v348 = vadd.f32 %v332, %v346
        %349 = vset.pattern.permute.xlu0 7
        %350 = vperm.xlu0 %349, %v188
        %v351 = vpop.permute.xlu0 %350
        %v353 = vlaneseq
        %v354 = vshrl.u32 %v353, 7
        %v355 = vsub.s32 2, %v354
        %v356 = vrot.slane %v315, %v355
        %v357 = vlaneseq
        %v358 = vshrl.u32 %v357, 7
        %v359 = vsub.s32 2, %v358
        %v360 = vrot.slane %v316, %v359
        %v361 = vmul.f32 %v351, %v356
        %v362 = vmul.f32 %v351, %v360
        %v363 = vadd.f32 %v347, %v361
        %v364 = vadd.f32 %v348, %v362
        %365 = vset.pattern.permute.xlu0 10
        %366 = vperm.xlu0 %365, %v188
        %v367 = vpop.permute.xlu0 %366
        %v369 = vlaneseq
        %v370 = vshrl.u32 %v369, 7
        %v371 = vsub.s32 3, %v370
        %v372 = vrot.slane %v315, %v371
        %v373 = vlaneseq
        %v374 = vshrl.u32 %v373, 7
        %v375 = vsub.s32 3, %v374
        %v376 = vrot.slane %v316, %v375
        %v377 = vmul.f32 %v367, %v372
        %v378 = vmul.f32 %v367, %v376
        %v379 = vadd.f32 %v363, %v377
        %v380 = vadd.f32 %v364, %v378
        %381 = vrot.lane.b32.xlu0 %v187, 126
        %v382 = vpop.permute.xlu0 %381
        %383 = vrot.lane.b32.xlu0 %v300, 126
        %v384 = vpop.permute.xlu0 %383
        %vm385 = vcmp.lt.s32.totalorder %v190, 126
        %v386 = vsel %vm385, %v382, %v384
        %v387 = vsel %vm385, %v384, %v382
        %vm388 = vcmp.lt.s32.totalorder %v192, 14
        %vm389 = vcmp.lt.s32.totalorder %v193, 14
        %v390 = vsel %vm388, 1, 0
        %v391 = vsel %vm389, 1, 0
        %vm392 = vcmp.eq.s32.totalorder %v390, 1
        %vm393 = vcmp.eq.s32.totalorder %v391, 1
        %v394 = vsel %vm392, %v386, 0.0
        %v395 = vsel %vm393, %v387, 0.0
        %396 = vset.pattern.permute.xlu0 2
        %397 = vperm.xlu0 %396, %v188
        %v398 = vpop.permute.xlu0 %397
        %v400 = vlaneseq
        %v401 = vshrl.u32 %v400, 7
        %v402 = vsub.s32 0, %v401
        %v403 = vrot.slane %v394, %v402
        %v404 = vlaneseq
        %v405 = vshrl.u32 %v404, 7
        %v406 = vsub.s32 0, %v405
        %v407 = vrot.slane %v395, %v406
        %v408 = vmul.f32 %v398, %v403
        %v409 = vmul.f32 %v398, %v407
        %v410 = vadd.f32 %v379, %v408
        %v411 = vadd.f32 %v380, %v409
        %412 = vset.pattern.permute.xlu0 5
        %413 = vperm.xlu0 %412, %v188
        %v414 = vpop.permute.xlu0 %413
        %v416 = vlaneseq
        %v417 = vshrl.u32 %v416, 7
        %v418 = vsub.s32 1, %v417
        %v419 = vrot.slane %v394, %v418
        %v420 = vlaneseq
        %v421 = vshrl.u32 %v420, 7
        %v422 = vsub.s32 1, %v421
        %v423 = vrot.slane %v395, %v422
        %v424 = vmul.f32 %v414, %v419
        %v425 = vmul.f32 %v414, %v423
        %v426 = vadd.f32 %v410, %v424
        %v427 = vadd.f32 %v411, %v425
        %428 = vset.pattern.permute.xlu0 8
        %429 = vperm.xlu0 %428, %v188
        %v430 = vpop.permute.xlu0 %429
        %v432 = vlaneseq
        %v433 = vshrl.u32 %v432, 7
        %v434 = vsub.s32 2, %v433
        %v435 = vrot.slane %v394, %v434
        %v436 = vlaneseq
        %v437 = vshrl.u32 %v436, 7
        %v438 = vsub.s32 2, %v437
        %v439 = vrot.slane %v395, %v438
        %v440 = vmul.f32 %v430, %v435
        %v441 = vmul.f32 %v430, %v439
        %v442 = vadd.f32 %v426, %v440
        %v443 = vadd.f32 %v427, %v441
        %444 = vset.pattern.permute.xlu0 11
        %445 = vperm.xlu0 %444, %v188
        %v446 = vpop.permute.xlu0 %445
        %v448 = vlaneseq
        %v449 = vshrl.u32 %v448, 7
        %v450 = vsub.s32 3, %v449
        %v451 = vrot.slane %v394, %v450
        %v452 = vlaneseq
        %v453 = vshrl.u32 %v452, 7
        %v454 = vsub.s32 3, %v453
        %v455 = vrot.slane %v395, %v454
        %v456 = vmul.f32 %v446, %v451
        %v457 = vmul.f32 %v446, %v455
        %v458 = vadd.f32 %v442, %v456
        %v459 = vadd.f32 %v443, %v457
        %v460 = vld [vmem:[%s2] sm:$0xff]
        %462 = vset.pattern.permute.xlu0 0
        %463 = vperm.xlu0 %462, %v460
        %v464 = vpop.permute.xlu0 %463
        %v466 = vadd.f32 %v458, %v464
        %v467 = vadd.f32 %v459, %v464
        %468 = vst [vmem:[%s186] sm:$0xff] %v466
        %469 = vst [vmem:[%s186 + $0x8] sm:$0xff] %v467
        %s470 = sand.u32 %s96, 1
        %s471 = scalar_lea.sflag [#allocation4], %s470
        %s472 = sand.u32 %s96, 1
        %s473 = smul.addr %s472, 16
        %s474 = scalar_lea.vmem [#allocation5], %s473
        // Predicated region
        $region37: #{tpu_custom_call.1} parent=31 // pred_check
          %p475 = pneg %p106
        $region38: #{tpu_custom_call.1} parent=31 // pred_check_branch
          %477 = sbr.rel (%p475) target = $region40
        $region39: #{tpu_custom_call.1} parent=31 // pred_region
          %s479 = ssub.s32 256, 256
          %480 = vsyncadd %s471, %s479
          %s481 = smul.addr %s20, 2
          %s482 = smul.addr %s481, 128
          %s483 = scalar_lea.hbm %s3, %s482
          %s485 = sshll.u32 %s474, 4
          %s486 = int_to_ptr.vmem [resolvable:$true] %s485
          %488 = dma.vmem_to_hbm [thread:$0]  %s486, 256, %s483, %s471
        $region40: #{tpu_custom_call.1} parent=31 // pred_fallthru
          _
      $region32: #{tpu_custom_call.1} parent=5 // pred_fallthru
        _
      %p489 = scmp.le.s32.totalorder 2, %s15
      // Predicated region
      $region41: #{tpu_custom_call.1} parent=5 // pred_check
        %p490 = pneg %p489
      $region42: #{tpu_custom_call.1} parent=5 // pred_check_branch
        %492 = sbr.rel (%p490) target = $region44
      $region43: #{tpu_custom_call.1} parent=5 // pred_region
        %s493 = ssub.s32 %s15, 2
        // Predicated region
        $region45: #{tpu_custom_call.1} parent=43 // pred_check
          %p494 = pneg %p112
        $region46: #{tpu_custom_call.1} parent=43 // pred_check_branch
          %496 = sbr.rel (%p494) target = $region48
        $region47: #{tpu_custom_call.1} parent=43 // pred_region
          %s497 = sand.u32 %s97, 1
          %s498 = scalar_lea.sflag [#allocation4], %s497
          %s499 = sand.u32 %s97, 1
          %s500 = smul.addr %s499, 16
          %s501 = scalar_lea.vmem [#allocation5], %s500
          %502 = dma.done %s498, 256
        $region48: #{tpu_custom_call.1} parent=43 // pred_fallthru
          _
      $region44: #{tpu_custom_call.1} parent=5 // pred_fallthru
        _
    $region6: #{tpu_custom_call.1} parent=1 // loop_footer
      %s19 = sadd.s32 1, %s15
    $region7: #{tpu_custom_call.1} parent=1 // loop_footer_branch
      %14 = sbr.rel target = $region3
    $region8: #{tpu_custom_call.1} parent=1 // loop_exit
      _
    %503 = vsyncpa [#allocation3], 1
    %s504 = scalar_lea.sflag [#allocation3], 1
    %505 = vsyncpa %s504, 1
    %506 = vsyncpa [#allocation4], 1
    %s507 = scalar_lea.sflag [#allocation4], 1
    %508 = vsyncpa %s507, 1

</llo_original>
